<compile_context>
chip_gen: v5e
topology: v5e:2x2
jax: 0.10.0
libtpu: 0.0.40
codegen_flags: <defaults>
</compile_context>

<pallas_src>
import jax
import jax.numpy as jnp
from jax.experimental import pallas as pl
from jax.experimental.pallas import tpu as pltpu

HIDDEN = 100        # logical hidden size (matches the torch module)
HIDDEN_PAD = 128    # lane-padded hidden size
LANE = 128
SUBLANE = 8
MAX_TB = 2048       # batch tile (rows); big tiles amortize per-step overhead, VMEM is tiny


def _round_up(x, m):
    return (x + m - 1) // m * m


def _mlp_kernel(x_ref, w1_ref, b1_ref, w2_ref, b2_ref, w3_ref, b3_ref, o_ref):
    """Fused 3-layer MLP with ReLU; hidden compute is lane-dense (128), output store
    is narrow (d_out lanes) to avoid writing padded HBM bytes.

    x_ref : (TB, D_in)           w1_ref: (D_in, 128)     b1_ref: (1, 128)
    w2_ref: (128, 128)           b2_ref: (1, 128)
    w3_ref: (128, OUT_PAD)       b3_ref: (1, OUT_PAD)
    o_ref : (TB, D_out)          with D_out <= OUT_PAD
    """
    x = x_ref[...]

    # Layer 1: Linear + ReLU  (MXU matmul, VPU bias-add / max)
    h1 = jnp.dot(x, w1_ref[...], preferred_element_type=jnp.float32) + b1_ref[...]
    h1 = jnp.maximum(h1, 0.0)

    # Layer 2: Linear + ReLU
    h2 = jnp.dot(h1, w2_ref[...], preferred_element_type=jnp.float32) + b2_ref[...]
    h2 = jnp.maximum(h2, 0.0)

    # Layer 3: Linear (no activation), computed lane-dense then stored narrow.
    out = jnp.dot(h2, w3_ref[...], preferred_element_type=jnp.float32) + b3_ref[...]
    d_out = o_ref.shape[-1]
    o_ref[...] = out[:, :d_out].astype(o_ref.dtype)


def _pad2(a, rows, cols):
    return jnp.pad(a, ((0, rows - a.shape[0]), (0, cols - a.shape[1])))


def prepare_params(params):
    """One-time lane-padding of weights/biases (padded lanes are exact zeros).

    params: dict with logical shapes:
        w1 (D_in, 100), b1 (1, 100), w2 (100, 100), b2 (1, 100),
        w3 (100, D_out), b3 (1, D_out)
    Returns a dict of padded arrays plus the logical d_out (Python int, static).
    """
    w1, b1 = params["w1"], params["b1"]
    w2, b2 = params["w2"], params["b2"]
    w3, b3 = params["w3"], params["b3"]
    d_in = w1.shape[0]
    d_out = w3.shape[1]
    out_pad = _round_up(d_out, LANE)
    return {
        "w1": _pad2(w1, d_in, HIDDEN_PAD), "b1": _pad2(b1, 1, HIDDEN_PAD),
        "w2": _pad2(w2, HIDDEN_PAD, HIDDEN_PAD), "b2": _pad2(b2, 1, HIDDEN_PAD),
        "w3": _pad2(w3, HIDDEN_PAD, out_pad), "b3": _pad2(b3, 1, out_pad),
        "d_out": d_out,
    }


def _batch_tiling(B):
    """Pick (tb, b_pad, num_tiles) minimizing padded rows; even tile count for v7x."""
    b8 = _round_up(B, SUBLANE)
    num_tiles = pl.cdiv(b8, MAX_TB)
    if num_tiles > 1:
        num_tiles = _round_up(num_tiles, 2)   # balance across v7x's 2 TensorCores
    tb = _round_up(pl.cdiv(b8, num_tiles), SUBLANE)
    b_pad = num_tiles * tb
    return tb, b_pad, num_tiles


def mlp_forward(x, prepared):
    """Run the fused MLP Pallas kernel.

    x: (B, input_size) float32
    prepared: output of prepare_params (lane-padded weights + logical d_out)
    Returns (B, d_out) float32.
    """
    w1p, b1p = prepared["w1"], prepared["b1"]
    w2p, b2p = prepared["w2"], prepared["b2"]
    w3p, b3p = prepared["w3"], prepared["b3"]
    d_out = prepared["d_out"]              # Python int, static
    out_pad = w3p.shape[1]

    B, d_in = x.shape
    tb, b_pad, num_tiles = _batch_tiling(B)

    # Only pad the batch when actually needed (skip the extra HBM copy otherwise).
    xp = x if b_pad == B else jnp.pad(x, ((0, b_pad - B), (0, 0)))
    grid = (num_tiles,)

    # x / out tiles march with the grid; weights & biases stay VMEM-resident (block 0,0).
    x_spec = pl.BlockSpec((tb, d_in), lambda i: (i, 0))
    out_spec = pl.BlockSpec((tb, d_out), lambda i: (i, 0))  # last dim == full array dim
    resident = lambda shp: pl.BlockSpec(shp, lambda i: (0, 0))

    flops = 2 * b_pad * (d_in * HIDDEN_PAD + HIDDEN_PAD * HIDDEN_PAD + HIDDEN_PAD * out_pad)
    bytes_accessed = 4 * (
        b_pad * d_in                                   # x
        + d_in * HIDDEN_PAD + HIDDEN_PAD               # w1, b1
        + HIDDEN_PAD * HIDDEN_PAD + HIDDEN_PAD         # w2, b2
        + HIDDEN_PAD * out_pad + out_pad               # w3, b3
        + b_pad * d_out                                # out (narrow writeback)
    )

    out_padded = pl.pallas_call(
        _mlp_kernel,
        out_shape=jax.ShapeDtypeStruct((b_pad, d_out), x.dtype),
        grid_spec=pltpu.PrefetchScalarGridSpec(
            num_scalar_prefetch=0,
            grid=grid,
            in_specs=[
                x_spec,
                resident(w1p.shape), resident(b1p.shape),
                resident(w2p.shape), resident(b2p.shape),
                resident(w3p.shape), resident(b3p.shape),
            ],
            out_specs=out_spec,
        ),
        compiler_params=pltpu.CompilerParams(
            dimension_semantics=("parallel",),   # v7x: shard batch tiles across 2 TCs
        ),
        cost_estimate=pl.CostEstimate(
            flops=flops, transcendentals=0, bytes_accessed=bytes_accessed),
    )(xp, w1p, b1p, w2p, b2p, w3p, b3p)

    # Slice away batch padding only if any was added (lane dim is already exact).
    return out_padded if b_pad == B else out_padded[:B]


def init_params(key, input_size, output_size, hidden=HIDDEN):
    """Deterministic init mirroring torch.nn.Linear default:
    U(-1/sqrt(fan_in), 1/sqrt(fan_in)) for both weights and biases."""
    ks = jax.random.split(key, 6)

    def lin(kw, kb, fan_in, fan_out):
        bound = 1.0 / jnp.sqrt(jnp.float32(fan_in))
        w = jax.random.uniform(kw, (fan_in, fan_out), jnp.float32, -bound, bound)
        b = jax.random.uniform(kb, (1, fan_out), jnp.float32, -bound, bound)
        return w, b

    w1, b1 = lin(ks[0], ks[1], input_size, hidden)
    w2, b2 = lin(ks[2], ks[3], hidden, hidden)
    w3, b3 = lin(ks[4], ks[5], hidden, output_size)
    return {"w1": w1, "b1": b1, "w2": w2, "b2": b2, "w3": w3, "b3": b3}


def mlp_reference(x, p):
    """Pure-JAX reference for correctness checking (unpadded, logical shapes)."""
    h1 = jnp.maximum(x @ p["w1"] + p["b1"], 0.0)
    h2 = jnp.maximum(h1 @ p["w2"] + p["b2"], 0.0)
    return h2 @ p["w3"] + p["b3"]


if __name__ == "__main__":
    input_size = 8    # e.g. a small state vector for the DQN
    output_size = 4   # e.g. number of discrete actions
    batch = 8

    key = jax.random.PRNGKey(0)
    k_params, k_x = jax.random.split(key)

    params = init_params(k_params, input_size, output_size)
    prepared = prepare_params(params)     # one-time lane padding, reused every call

    # jit the wrapper so the (rare) pad/slice fuses with the surrounding graph;
    # `prepared` (incl. the static d_out int) is closed over.
    fwd = jax.jit(lambda s: mlp_forward(s, prepared))

    states = jax.random.normal(k_x, (batch, input_size), jnp.float32)
    out = jax.block_until_ready(fwd(states))

    ref = mlp_reference(states, params)
    assert out.shape == (batch, output_size), out.shape
    assert jnp.allclose(out, ref, atol=1e-4, rtol=1e-4), "mismatch vs JAX reference"

    # Awkward batch (padding path, single tile after the improved tile math).
    mid = jax.random.normal(jax.random.PRNGKey(1), (1030, input_size), jnp.float32)
    out_mid = jax.block_until_ready(fwd(mid))
    assert out_mid.shape == (1030, output_size)
    assert jnp.allclose(out_mid, mlp_reference(mid, params), atol=1e-4, rtol=1e-4)

    # Large batch (multi-tile grid path; even tile count for v7x balance).
    big = jax.random.normal(jax.random.PRNGKey(2), (4100, input_size), jnp.float32)
    out_big = jax.block_until_ready(fwd(big))
    assert out_big.shape == (4100, output_size)
    assert jnp.allclose(out_big, mlp_reference(big, params), atol=1e-4, rtol=1e-4)

    print("KERNEL_OK")
</pallas_src>

<mosaic_0001>
module attributes {stable_mosaic.version = 11 : i64} {
  func.func @_mlp_kernel(%arg0: i32, %arg1: memref<8x8xf32, #tpu.memory_space<vmem>>, %arg2: memref<8x128xf32, #tpu.memory_space<vmem>>, %arg3: memref<1x128xf32, #tpu.memory_space<vmem>>, %arg4: memref<128x128xf32, #tpu.memory_space<vmem>>, %arg5: memref<1x128xf32, #tpu.memory_space<vmem>>, %arg6: memref<128x128xf32, #tpu.memory_space<vmem>>, %arg7: memref<1x128xf32, #tpu.memory_space<vmem>>, %arg8: memref<8x4xf32, #tpu.memory_space<vmem>>) attributes {dimension_semantics = [#tpu.dimension_semantics<parallel>], iteration_bounds = array<i64: 1>, scalar_prefetch = 0 : i64, scratch_operands = 0 : i64, tpu.core_type = #tpu.core_type<tc>, window_params = [{transform_indices = @transform_0, window_bounds = array<i64: 8, 8>}, {pipeline_mode = #tpu.pipeline_mode<synchronous>, transform_indices = @transform_1, window_bounds = array<i64: 8, 128>}, {pipeline_mode = #tpu.pipeline_mode<synchronous>, transform_indices = @transform_2, window_bounds = array<i64: 1, 128>}, {pipeline_mode = #tpu.pipeline_mode<synchronous>, transform_indices = @transform_3, window_bounds = array<i64: 128, 128>}, {pipeline_mode = #tpu.pipeline_mode<synchronous>, transform_indices = @transform_4, window_bounds = array<i64: 1, 128>}, {pipeline_mode = #tpu.pipeline_mode<synchronous>, transform_indices = @transform_5, window_bounds = array<i64: 128, 128>}, {pipeline_mode = #tpu.pipeline_mode<synchronous>, transform_indices = @transform_6, window_bounds = array<i64: 1, 128>}, {transform_indices = @transform_7, window_bounds = array<i64: 8, 4>}]} {
    %c0 = arith.constant 0 : index
    %c0_0 = arith.constant 0 : index
    %0 = vector.load %arg1[%c0, %c0_0] : memref<8x8xf32, #tpu.memory_space<vmem>>, vector<8x8xf32>
    %c0_1 = arith.constant 0 : index
    %c0_2 = arith.constant 0 : index
    %1 = vector.load %arg2[%c0_1, %c0_2] : memref<8x128xf32, #tpu.memory_space<vmem>>, vector<8x128xf32>
    %cst = arith.constant dense<0.000000e+00> : vector<8x128xf32>
    %2 = tpu.matmul %0, %1, %cst {dimension_numbers = #tpu.dot_dimension_numbers<[1], [0], [0], [1], [0, 0, 1, 1], [], []>} : vector<8x8xf32>, vector<8x128xf32>, vector<8x128xf32> -> vector<8x128xf32>
    %c0_3 = arith.constant 0 : index
    %c0_4 = arith.constant 0 : index
    %3 = vector.load %arg3[%c0_3, %c0_4] : memref<1x128xf32, #tpu.memory_space<vmem>>, vector<1x128xf32>
    %4 = vector.broadcast %3 : vector<1x128xf32> to vector<8x128xf32>
    %5 = arith.addf %2, %4 : vector<8x128xf32>
    %cst_5 = arith.constant 0.000000e+00 : f32
    %6 = vector.broadcast %cst_5 : f32 to vector<8x128xf32>
    %7 = arith.maximumf %5, %6 : vector<8x128xf32>
    %c0_6 = arith.constant 0 : index
    %c0_7 = arith.constant 0 : index
    %8 = vector.load %arg4[%c0_6, %c0_7] : memref<128x128xf32, #tpu.memory_space<vmem>>, vector<128x128xf32>
    %cst_8 = arith.constant dense<0.000000e+00> : vector<8x128xf32>
    %9 = tpu.matmul %7, %8, %cst_8 {dimension_numbers = #tpu.dot_dimension_numbers<[1], [0], [0], [1], [0, 0, 1, 1], [], []>} : vector<8x128xf32>, vector<128x128xf32>, vector<8x128xf32> -> vector<8x128xf32>
    %c0_9 = arith.constant 0 : index
    %c0_10 = arith.constant 0 : index
    %10 = vector.load %arg5[%c0_9, %c0_10] : memref<1x128xf32, #tpu.memory_space<vmem>>, vector<1x128xf32>
    %11 = vector.broadcast %10 : vector<1x128xf32> to vector<8x128xf32>
    %12 = arith.addf %9, %11 : vector<8x128xf32>
    %cst_11 = arith.constant 0.000000e+00 : f32
    %13 = vector.broadcast %cst_11 : f32 to vector<8x128xf32>
    %14 = arith.maximumf %12, %13 : vector<8x128xf32>
    %c0_12 = arith.constant 0 : index
    %c0_13 = arith.constant 0 : index
    %15 = vector.load %arg6[%c0_12, %c0_13] : memref<128x128xf32, #tpu.memory_space<vmem>>, vector<128x128xf32>
    %cst_14 = arith.constant dense<0.000000e+00> : vector<8x128xf32>
    %16 = tpu.matmul %14, %15, %cst_14 {dimension_numbers = #tpu.dot_dimension_numbers<[1], [0], [0], [1], [0, 0, 1, 1], [], []>} : vector<8x128xf32>, vector<128x128xf32>, vector<8x128xf32> -> vector<8x128xf32>
    %c0_15 = arith.constant 0 : index
    %c0_16 = arith.constant 0 : index
    %17 = vector.load %arg7[%c0_15, %c0_16] : memref<1x128xf32, #tpu.memory_space<vmem>>, vector<1x128xf32>
    %18 = vector.broadcast %17 : vector<1x128xf32> to vector<8x128xf32>
    %19 = arith.addf %16, %18 : vector<8x128xf32>
    %20 = vector.extract_strided_slice %19 {offsets = [0, 0], sizes = [8, 4], strides = [1, 1]} : vector<8x128xf32> to vector<8x4xf32>
    %c0_17 = arith.constant 0 : index
    %c0_18 = arith.constant 0 : index
    %21 = vector.load %arg8[%c0_17, %c0_18] : memref<8x4xf32, #tpu.memory_space<vmem>>, vector<8x4xf32>
    tpu.vector_store %arg8[%c0_17, %c0_18], %20 {strides = array<i32>} : memref<8x4xf32, #tpu.memory_space<vmem>>, vector<8x4xf32>,
    return
  }
  func.func @transform_0(%arg0: i32) -> (i32, i32) {
    %c0_i32 = arith.constant 0 : i32
    %c0_i32_0 = arith.constant 0 : i32
    return %arg0, %c0_i32 : i32, i32
  }
  func.func @transform_1(%arg0: i32) -> (i32, i32) {
    %c0_i32 = arith.constant 0 : i32
    %c0_i32_0 = arith.constant 0 : i32
    %c0_i32_1 = arith.constant 0 : i32
    return %c0_i32, %c0_i32_0 : i32, i32
  }
  func.func @transform_2(%arg0: i32) -> (i32, i32) {
    %c0_i32 = arith.constant 0 : i32
    %c0_i32_0 = arith.constant 0 : i32
    %c0_i32_1 = arith.constant 0 : i32
    return %c0_i32, %c0_i32_0 : i32, i32
  }
  func.func @transform_3(%arg0: i32) -> (i32, i32) {
    %c0_i32 = arith.constant 0 : i32
    %c0_i32_0 = arith.constant 0 : i32
    %c0_i32_1 = arith.constant 0 : i32
    return %c0_i32, %c0_i32_0 : i32, i32
  }
  func.func @transform_4(%arg0: i32) -> (i32, i32) {
    %c0_i32 = arith.constant 0 : i32
    %c0_i32_0 = arith.constant 0 : i32
    %c0_i32_1 = arith.constant 0 : i32
    return %c0_i32, %c0_i32_0 : i32, i32
  }
  func.func @transform_5(%arg0: i32) -> (i32, i32) {
    %c0_i32 = arith.constant 0 : i32
    %c0_i32_0 = arith.constant 0 : i32
    %c0_i32_1 = arith.constant 0 : i32
    return %c0_i32, %c0_i32_0 : i32, i32
  }
  func.func @transform_6(%arg0: i32) -> (i32, i32) {
    %c0_i32 = arith.constant 0 : i32
    %c0_i32_0 = arith.constant 0 : i32
    %c0_i32_1 = arith.constant 0 : i32
    return %c0_i32, %c0_i32_0 : i32, i32
  }
  func.func @transform_7(%arg0: i32) -> (i32, i32) {
    %c0_i32 = arith.constant 0 : i32
    %c0_i32_0 = arith.constant 0 : i32
    return %arg0, %c0_i32 : i32, i32
  }
}

</mosaic_0001>

<llo_original>
// kernel: _lambda_.1
$region0: #{_lambda_.1}
  #allocation0 [shape = 'u32[]', space=smem, size = 0x4, offset = 0x4, fixed_abs, tag = 'smem constant byte address 0x4 - core index']
  #allocation1 [shape = 'u32[72,128]{1,0:T(1,128)}', space=vmem, size = 0x9000, scoped, tag = 'internal scratch']
  %s0 = inlined_call_operand.hbm [shape: f32[8,8], index: 0, kind: input, shape index: {}]
  %s1 = inlined_call_operand.hbm [shape: f32[8,128], index: 1, kind: input, shape index: {}]
  %s2 = inlined_call_operand.hbm [shape: f32[1,128], index: 2, kind: input, shape index: {}]
  %s3 = inlined_call_operand.hbm [shape: f32[128,128], index: 3, kind: input, shape index: {}]
  %s4 = inlined_call_operand.vmem [shape: f32[1,128], index: 4, kind: input, shape index: {}]
  %s5 = inlined_call_operand.hbm [shape: f32[128,128], index: 5, kind: input, shape index: {}]
  %s6 = inlined_call_operand.vmem [shape: f32[1,128], index: 6, kind: input, shape index: {}]
  %s7 = inlined_call_operand.vmem [shape: f32[8,4], index: 7, kind: output, shape index: {}]
  %s8 = sld [smem:[#allocation0]]
  $region58: #{_lambda_.1} parent=0
    _
  %s10 = ssub.s32 1, %s8
  %s11 = scalar_select 0, %s10, %s8
  $region1: #{_lambda_.1} parent=0
    #allocation2 [shape = 'u8[4096]{0}', space=vmem, size = 0x1000, scoped, tag = 'input window, operand 0, single buffered']
    #allocation3 [shape = 's32[1]{0}', space=sflag, size = 0x4, scoped, tag = 'scoped memory for _lambda_.1']
    #allocation4 [shape = 'u8[4096]{0}', space=vmem, size = 0x1000, scoped, tag = 'input window, operand 1, single buffered']
    #allocation5 [shape = 's32[1]{0}', space=sflag, size = 0x4, scoped, tag = 'scoped memory for _lambda_.1']
    #allocation6 [shape = 'u8[512]{0}', space=vmem, size = 0x400, scoped, tag = 'input window, operand 2, single buffered']
    #allocation7 [shape = 'u8[65536]{0}', space=vmem, size = 0x10000, scoped, tag = 'input window, operand 3, single buffered']
    #allocation8 [shape = 's32[1]{0}', space=sflag, size = 0x4, scoped, tag = 'scoped memory for _lambda_.1']
    #allocation9 [shape = 'u8[65536]{0}', space=vmem, size = 0x10000, scoped, tag = 'input window, operand 5, single buffered']
    %12 = vsyncpa [#allocation3], 0
    %13 = vsyncpa [#allocation5], 0
    %14 = vsyncpa [#allocation8], 0
    // Predicated region
    $region2: #{_lambda_.1} parent=1 // pred_check
      _
    $region3: #{_lambda_.1} parent=1 // pred_check_branch
      %16 = sbr.rel (0) target = $region5
    $region4: #{_lambda_.1} parent=1 // pred_region
      %18 = vsyncadd [#allocation3], 0
      %s20 = sshll.u32 %s0, 4
      %s21 = int_to_ptr.hbm [resolvable:$true] %s20
      %s22 = sshll.u32 [#allocation2], 4
      %s23 = int_to_ptr.vmem [resolvable:$true] %s22
      %25 = dma.hbm_to_vmem [thread:$0]  %s21, 128, %s23, [#allocation3]
    $region5: #{_lambda_.1} parent=1 // pred_fallthru
      _
    // Predicated region
    $region6: #{_lambda_.1} parent=1 // pred_check
      _
    $region7: #{_lambda_.1} parent=1 // pred_check_branch
      %27 = sbr.rel (0) target = $region9
    $region8: #{_lambda_.1} parent=1 // pred_region
      %29 = vsyncadd [#allocation5], 0
      %s31 = sshll.u32 %s1, 4
      %s32 = int_to_ptr.hbm [resolvable:$true] %s31
      %s33 = sshll.u32 [#allocation4], 4
      %s34 = int_to_ptr.vmem [resolvable:$true] %s33
      %36 = dma.hbm_to_vmem [thread:$0]  %s32, 128, %s34, [#allocation5]
    $region9: #{_lambda_.1} parent=1 // pred_fallthru
      _
    // Predicated region
    $region10: #{_lambda_.1} parent=1 // pred_check
      _
    $region11: #{_lambda_.1} parent=1 // pred_check_branch
      %38 = sbr.rel (0) target = $region13
    $region12: #{_lambda_.1} parent=1 // pred_region
      %40 = vsyncadd [#allocation5], 0
      %s42 = sshll.u32 %s2, 4
      %s43 = int_to_ptr.hbm [resolvable:$true] %s42
      %s44 = sshll.u32 [#allocation6], 4
      %s45 = int_to_ptr.vmem [resolvable:$true] %s44
      %47 = dma.hbm_to_vmem [thread:$0]  %s43, 16, %s45, [#allocation5]
    $region13: #{_lambda_.1} parent=1 // pred_fallthru
      _
    // Predicated region
    $region14: #{_lambda_.1} parent=1 // pred_check
      _
    $region15: #{_lambda_.1} parent=1 // pred_check_branch
      %49 = sbr.rel (0) target = $region17
    $region16: #{_lambda_.1} parent=1 // pred_region
      %51 = vsyncadd [#allocation8], 0
      %s52 = sshll.u32 %s3, 4
      %s53 = int_to_ptr.hbm [resolvable:$true] %s52
      %s54 = sshll.u32 [#allocation7], 4
      %s55 = int_to_ptr.vmem [resolvable:$true] %s54
      %60 = dma.hbm_to_vmem [thread:$0]  %s53, 2048, %s55, [#allocation8], 128, 128, 8
    $region17: #{_lambda_.1} parent=1 // pred_fallthru
      _
    // Predicated region
    $region18: #{_lambda_.1} parent=1 // pred_check
      _
    $region19: #{_lambda_.1} parent=1 // pred_check_branch
      %62 = sbr.rel (0) target = $region21
    $region20: #{_lambda_.1} parent=1 // pred_region
      _
    $region21: #{_lambda_.1} parent=1 // pred_fallthru
      _
    // Predicated region
    $region22: #{_lambda_.1} parent=1 // pred_check
      _
    $region23: #{_lambda_.1} parent=1 // pred_check_branch
      %64 = sbr.rel (0) target = $region25
    $region24: #{_lambda_.1} parent=1 // pred_region
      %66 = vsyncadd [#allocation8], 0
      %s67 = sshll.u32 %s5, 4
      %s68 = int_to_ptr.hbm [resolvable:$true] %s67
      %s69 = sshll.u32 [#allocation9], 4
      %s70 = int_to_ptr.vmem [resolvable:$true] %s69
      %75 = dma.hbm_to_vmem [thread:$0]  %s68, 2048, %s70, [#allocation8], 128, 128, 8
    $region25: #{_lambda_.1} parent=1 // pred_fallthru
      _
    // Predicated region
    $region26: #{_lambda_.1} parent=1 // pred_check
      _
    $region27: #{_lambda_.1} parent=1 // pred_check_branch
      %77 = sbr.rel (0) target = $region29
    $region28: #{_lambda_.1} parent=1 // pred_region
      _
    $region29: #{_lambda_.1} parent=1 // pred_fallthru
      _
    // Predicated region
    $region30: #{_lambda_.1} parent=1 // pred_check
      _
    $region31: #{_lambda_.1} parent=1 // pred_check_branch
      %79 = sbr.rel (0) target = $region33
    $region32: #{_lambda_.1} parent=1 // pred_region
      %81 = dma.done [#allocation3], 128
    $region33: #{_lambda_.1} parent=1 // pred_fallthru
      _
    // Predicated region
    $region34: #{_lambda_.1} parent=1 // pred_check
      _
    $region35: #{_lambda_.1} parent=1 // pred_check_branch
      %83 = sbr.rel (0) target = $region37
    $region36: #{_lambda_.1} parent=1 // pred_region
      %85 = dma.done [#allocation5], 128
    $region37: #{_lambda_.1} parent=1 // pred_fallthru
      _
    // Predicated region
    $region38: #{_lambda_.1} parent=1 // pred_check
      _
    $region39: #{_lambda_.1} parent=1 // pred_check_branch
      %87 = sbr.rel (0) target = $region41
    $region40: #{_lambda_.1} parent=1 // pred_region
      %89 = dma.done [#allocation5], 16
    $region41: #{_lambda_.1} parent=1 // pred_fallthru
      _
    // Predicated region
    $region42: #{_lambda_.1} parent=1 // pred_check
      _
    $region43: #{_lambda_.1} parent=1 // pred_check_branch
      %91 = sbr.rel (0) target = $region45
    $region44: #{_lambda_.1} parent=1 // pred_region
      %93 = dma.done [#allocation8], 2048
    $region45: #{_lambda_.1} parent=1 // pred_fallthru
      _
    // Predicated region
    $region46: #{_lambda_.1} parent=1 // pred_check
      _
    $region47: #{_lambda_.1} parent=1 // pred_check_branch
      %95 = sbr.rel (0) target = $region49
    $region48: #{_lambda_.1} parent=1 // pred_region
      %97 = dma.done [#allocation8], 2048
    $region49: #{_lambda_.1} parent=1 // pred_fallthru
      _
    %v98 = vld [vmem:[#allocation2] sm:$0xff]
    %v99 = vld [vmem:[#allocation4] sm:$0xff]
    %v100 = vld [vmem:[#allocation6] sm:$0x1]
    %v102 = vperm.slane %v100, 0
    %vm104 = vcmask 64512
    %v106 = vsel %vm104, %v98, 0
    %108 = vmatpush.msra.mxu0 0.0
    %109 = vmatpush.msra.mxu0 0.0
    %110 = vmatpush.msra.mxu0 0.0
    %111 = vmatpush.msra.mxu0 0.0
    %112 = vmatpush.msra.mxu0 0.0
    %113 = vmatpush.msra.mxu0 0.0
    %114 = vmatpush.msra.mxu0 0.0
    %115 = vmatpush.msra.mxu0 0.0
    %116 = vmatpush.msra.mxu0 0.0
    %117 = vmatpush.msra.mxu0 0.0
    %118 = vmatpush.msra.mxu0 0.0
    %119 = vmatpush.msra.mxu0 0.0
    %120 = vmatpush.msra.mxu0 0.0
    %121 = vmatpush.msra.mxu0 0.0
    %122 = vmatpush.msra.mxu0 0.0
    %123 = vmatpush.msra.mxu0 %v99
    %124 = vmatmul.f32.gmra.mxu0 %v106
    %v125 = vpop.f32.mrf.mxu0
    %v126 = vadd.f32 %v102, %v125
    %127 = vdwg.mxu0
    %v128 = vmax.f32 %v126, 0.0
    %v129 = vld [vmem:[#allocation7] sm:$0xff]
    %v130 = vld [vmem:[#allocation7 + $0x8] sm:$0xff]
    %v131 = vld [vmem:[#allocation7 + $0x10] sm:$0xff]
    %v132 = vld [vmem:[#allocation7 + $0x18] sm:$0xff]
    %v133 = vld [vmem:[#allocation7 + $0x20] sm:$0xff]
    %v134 = vld [vmem:[#allocation7 + $0x28] sm:$0xff]
    %v135 = vld [vmem:[#allocation7 + $0x30] sm:$0xff]
    %v136 = vld [vmem:[#allocation7 + $0x38] sm:$0xff]
    %v137 = vld [vmem:[#allocation7 + $0x40] sm:$0xff]
    %v138 = vld [vmem:[#allocation7 + $0x48] sm:$0xff]
    %v139 = vld [vmem:[#allocation7 + $0x50] sm:$0xff]
    %v140 = vld [vmem:[#allocation7 + $0x58] sm:$0xff]
    %v141 = vld [vmem:[#allocation7 + $0x60] sm:$0xff]
    %v142 = vld [vmem:[#allocation7 + $0x68] sm:$0xff]
    %v143 = vld [vmem:[#allocation7 + $0x70] sm:$0xff]
    %v144 = vld [vmem:[#allocation7 + $0x78] sm:$0xff]
    %v145 = vld [vmem:[%s4] sm:$0x1]
    %v147 = vperm.slane %v145, 0
    %149 = vmatpush.msra.mxu0 %v144
    %150 = vmatpush.msra.mxu0 %v143
    %151 = vmatpush.msra.mxu0 %v142
    %152 = vmatpush.msra.mxu0 %v141
    %153 = vmatpush.msra.mxu0 %v140
    %154 = vmatpush.msra.mxu0 %v139
    %155 = vmatpush.msra.mxu0 %v138
    %156 = vmatpush.msra.mxu0 %v137
    %157 = vmatpush.msra.mxu0 %v136
    %158 = vmatpush.msra.mxu0 %v135
    %159 = vmatpush.msra.mxu0 %v134
    %160 = vmatpush.msra.mxu0 %v133
    %161 = vmatpush.msra.mxu0 %v132
    %162 = vmatpush.msra.mxu0 %v131
    %163 = vmatpush.msra.mxu0 %v130
    %164 = vmatpush.msra.mxu0 %v129
    %165 = vmatmul.f32.gmra.mxu0 %v128
    %v166 = vpop.f32.mrf.mxu0
    %v167 = vadd.f32 %v147, %v166
    %168 = vdwg.mxu0
    %v169 = vmax.f32 %v167, 0.0
    %v170 = vld [vmem:[#allocation9] sm:$0xff]
    %v171 = vld [vmem:[#allocation9 + $0x8] sm:$0xff]
    %v172 = vld [vmem:[#allocation9 + $0x10] sm:$0xff]
    %v173 = vld [vmem:[#allocation9 + $0x18] sm:$0xff]
    %v174 = vld [vmem:[#allocation9 + $0x20] sm:$0xff]
    %v175 = vld [vmem:[#allocation9 + $0x28] sm:$0xff]
    %v176 = vld [vmem:[#allocation9 + $0x30] sm:$0xff]
    %v177 = vld [vmem:[#allocation9 + $0x38] sm:$0xff]
    %v178 = vld [vmem:[#allocation9 + $0x40] sm:$0xff]
    %v179 = vld [vmem:[#allocation9 + $0x48] sm:$0xff]
    %v180 = vld [vmem:[#allocation9 + $0x50] sm:$0xff]
    %v181 = vld [vmem:[#allocation9 + $0x58] sm:$0xff]
    %v182 = vld [vmem:[#allocation9 + $0x60] sm:$0xff]
    %v183 = vld [vmem:[#allocation9 + $0x68] sm:$0xff]
    %v184 = vld [vmem:[#allocation9 + $0x70] sm:$0xff]
    %v185 = vld [vmem:[#allocation9 + $0x78] sm:$0xff]
    %v186 = vld [vmem:[%s6] sm:$0x1]
    %v188 = vperm.slane %v186, 0
    %190 = vmatpush.msra.mxu0 %v185
    %191 = vmatpush.msra.mxu0 %v184
    %192 = vmatpush.msra.mxu0 %v183
    %193 = vmatpush.msra.mxu0 %v182
    %194 = vmatpush.msra.mxu0 %v181
    %195 = vmatpush.msra.mxu0 %v180
    %196 = vmatpush.msra.mxu0 %v179
    %197 = vmatpush.msra.mxu0 %v178
    %198 = vmatpush.msra.mxu0 %v177
    %199 = vmatpush.msra.mxu0 %v176
    %200 = vmatpush.msra.mxu0 %v175
    %201 = vmatpush.msra.mxu0 %v174
    %202 = vmatpush.msra.mxu0 %v173
    %203 = vmatpush.msra.mxu0 %v172
    %204 = vmatpush.msra.mxu0 %v171
    %205 = vmatpush.msra.mxu0 %v170
    %206 = vmatmul.f32.gmra.mxu0 %v169
    %v207 = vpop.f32.mrf.mxu0
    %v208 = vadd.f32 %v188, %v207
    %209 = vdwg.mxu0
    %vm210 = vcmask 31744
    %211 = vst.msk [vmem:[%s7] sm:$0xff] %vm210, %v208
    // Predicated region
    $region50: #{_lambda_.1} parent=1 // pred_check
      _
    $region51: #{_lambda_.1} parent=1 // pred_check_branch
      %213 = sbr.rel (0) target = $region53
    $region52: #{_lambda_.1} parent=1 // pred_region
      _
    $region53: #{_lambda_.1} parent=1 // pred_fallthru
      _
    // Predicated region
    $region54: #{_lambda_.1} parent=1 // pred_check
      _
    $region55: #{_lambda_.1} parent=1 // pred_check_branch
      %215 = sbr.rel (0) target = $region57
    $region56: #{_lambda_.1} parent=1 // pred_region
      _
    $region57: #{_lambda_.1} parent=1 // pred_fallthru
      _
    %216 = vsyncpa [#allocation3], 1
    %217 = vsyncpa [#allocation5], 1
    %218 = vsyncpa [#allocation8], 1

</llo_original>
